<compile_context>
chip_gen: v5e
topology: v5e:2x2
jax: 0.10.0
libtpu: 0.0.40
codegen_flags: <defaults>
</compile_context>

<pallas_src>
import jax
import jax.numpy as jnp
from jax.experimental import pallas as pl
from jax.experimental.pallas import tpu as pltpu


def _fusion_mlp_kernel(v_ref, a_ref,
                       w1v_ref, w1a_ref, b1_ref,
                       w2_ref, b2_ref,
                       w3_ref, b3_ref,
                       o_ref):
    # Narrow the f32 activations to bf16 in VMEM (cheap VPU cast) so every
    # matmul stays on the bf16 MXU path; accumulation is f32.
    v16 = v_ref[...].astype(jnp.bfloat16)          # (tile_b, Dv)
    a16 = a_ref[...].astype(jnp.bfloat16)          # (tile_b, Da)

    # fc1 == W1 @ concat(v, a)^T, computed as TWO accumulating einsums on the
    # visual / audio halves of W1 (contract the feature axis of both operands).
    # No concat scratch, no masked vst passes; the MXU has huge slack here.
    h1 = (jnp.einsum("hd,bd->hb", w1v_ref[...], v16,
                     preferred_element_type=jnp.float32)
          + jnp.einsum("hd,bd->hb", w1a_ref[...], a16,
                       preferred_element_type=jnp.float32)
          + b1_ref[...])                            # (H1, tile_b), lane-dense
    h1 = jnp.maximum(h1, 0.0)

    # fc2 + ReLU (re-narrow only the MXU feed).
    h2 = jnp.dot(w2_ref[...], h1.astype(jnp.bfloat16),
                 preferred_element_type=jnp.float32) + b2_ref[...]
    h2 = jnp.maximum(h2, 0.0)                       # (H2, tile_b)

    # fc3 (logits, no activation) -> lane-dense (C, tile_b) store.
    o_ref[...] = (jnp.dot(w3_ref[...], h2.astype(jnp.bfloat16),
                          preferred_element_type=jnp.float32)
                  + b3_ref[...]).astype(o_ref.dtype)


# ~13 MiB VMEM footprint at D=128 with f32 double-buffered inputs + in-kernel
# bf16 copies + f32 h1/h2 temporaries; comfortably under the 32 MiB scoped
# limit requested below on every generation (v5e/v6e 128 MiB, v7x 64 MiB phys).
_TILE_B_CAP = 8192


def _pick_tile_b(B):
    """Batch tile selection.

    v5e/v6e (single TensorCore): the grid is a sequential loop, so the largest
    tile / fewest steps is strictly best -> one full-batch block when it fits.
    Larger batches: tile_b must divide B and be a multiple of 128 (it is the
    lane dim of the output block and the sublane dim of the input blocks).
    Prefer an even number of grid steps so v7x's two TensorCores split the
    "parallel" batch axis evenly (>= 2 steps per core lets double-buffering
    hide the input DMA); among those, take the largest tile.
    """
    if B <= _TILE_B_CAP:
        return B
    cands = [t for t in range(128, _TILE_B_CAP + 1, 128) if B % t == 0]
    if not cands:
        return B  # awkward B (no 128-multiple divisor): one full-batch block
    even = [t for t in cands if (B // t) % 2 == 0]
    return max(even) if even else max(cands)


def audiovisual_fusion_forward(visual, audio, params, *, tile_b=None):
    """visual: (B, Dv) f32, audio: (B, Da) f32 -> (B, num_classes) f32 logits."""
    B, Dv = visual.shape
    B2, Da = audio.shape
    assert B == B2
    w1, b1, w2, b2, w3, b3 = params        # PyTorch layout: w (out, in), b (out,)
    H1, D = w1.shape
    H2 = w2.shape[0]
    C = w3.shape[0]
    assert D == Dv + Da

    if tile_b is None:
        tile_b = _pick_tile_b(B)
    assert B % tile_b == 0
    grid = (B // tile_b,)

    # Only the ~20 KB of weights are narrowed on the wrapper side; activations
    # stay f32 in HBM and are narrowed in VMEM inside the kernel.  fc1's weight
    # is split statically into its visual / audio halves (the concat never
    # materializes anywhere).
    w1v = w1[:, :Dv].astype(jnp.bfloat16)
    w1a = w1[:, Dv:].astype(jnp.bfloat16)
    w2_b = w2.astype(jnp.bfloat16)
    w3_b = w3.astype(jnp.bfloat16)
    b1_f = b1.reshape(H1, 1).astype(jnp.float32)
    b2_f = b2.reshape(H2, 1).astype(jnp.float32)
    b3_f = b3.reshape(C, 1).astype(jnp.float32)

    const = lambda i: (0, 0)  # weights/biases: same (only) block every step

    flops = 2 * B * (D * H1 + H1 * H2 + H2 * C)
    bytes_accessed = (B * D * 4                           # f32 inputs
                      + B * C * 4                         # f32 output
                      + (D * H1 + H1 * H2 + H2 * C) * 2   # bf16 weights
                      + (H1 + H2 + C) * 4)                # f32 biases

    out_t = pl.pallas_call(
        _fusion_mlp_kernel,
        out_shape=jax.ShapeDtypeStruct((C, B), jnp.float32),
        grid_spec=pltpu.PrefetchScalarGridSpec(
            num_scalar_prefetch=0,
            grid=grid,
            in_specs=[
                pl.BlockSpec((tile_b, Dv), lambda i: (i, 0)),
                pl.BlockSpec((tile_b, Da), lambda i: (i, 0)),
                pl.BlockSpec((H1, Dv), const),
                pl.BlockSpec((H1, Da), const),
                pl.BlockSpec((H1, 1), const),
                pl.BlockSpec((H2, H1), const),
                pl.BlockSpec((H2, 1), const),
                pl.BlockSpec((C, H2), const),
                pl.BlockSpec((C, 1), const),
            ],
            # Lane-dense output block: batch on the 128-lane axis.
            out_specs=pl.BlockSpec((C, tile_b), lambda i: (0, i)),
        ),
        compiler_params=pltpu.CompilerParams(
            dimension_semantics=("parallel",),
            vmem_limit_bytes=32 << 20),
        cost_estimate=pl.CostEstimate(flops=flops, transcendentals=0,
                                      bytes_accessed=bytes_accessed),
    )(visual, audio, w1v, w1a, b1_f, w2_b, b2_f, w3_b, b3_f)

    # (C, B) -> (B, C): a few KB; trivial wrapper-side transpose.
    return out_t.T


def init_params(key, d_visual, d_audio, num_classes):
    """PyTorch nn.Linear default init: U(-1/sqrt(fan_in), 1/sqrt(fan_in)).
    Weights stored in PyTorch layout (out_features, in_features)."""
    d_in = d_visual + d_audio
    dims = [(d_in, 32), (32, 16), (16, num_classes)]
    keys = jax.random.split(key, 2 * len(dims))
    params = []
    for li, (fan_in, fan_out) in enumerate(dims):
        bound = 1.0 / (fan_in ** 0.5)
        w = jax.random.uniform(keys[2 * li], (fan_out, fan_in),
                               minval=-bound, maxval=bound, dtype=jnp.float32)
        b = jax.random.uniform(keys[2 * li + 1], (fan_out,),
                               minval=-bound, maxval=bound, dtype=jnp.float32)
        params += [w, b]
    return tuple(params)


def reference_forward_bf16(visual, audio, params):
    """Mirrors the kernel's dtype strategy (bf16 MXU operands, f32 accum)."""
    w1, b1, w2, b2, w3, b3 = params
    fused = jnp.concatenate([visual, audio], axis=1).astype(jnp.bfloat16)
    h1 = jnp.maximum(jnp.dot(fused, w1.T.astype(jnp.bfloat16),
                             preferred_element_type=jnp.float32) + b1, 0.0)
    h2 = jnp.maximum(jnp.dot(h1.astype(jnp.bfloat16), w2.T.astype(jnp.bfloat16),
                             preferred_element_type=jnp.float32) + b2, 0.0)
    return jnp.dot(h2.astype(jnp.bfloat16), w3.T.astype(jnp.bfloat16),
                   preferred_element_type=jnp.float32) + b3


def reference_forward_f32(visual, audio, params):
    """Full-f32 reference matching the PyTorch module exactly."""
    w1, b1, w2, b2, w3, b3 = params
    fused = jnp.concatenate([visual, audio], axis=1)
    x = jnp.maximum(fused @ w1.T + b1, 0.0)
    x = jnp.maximum(x @ w2.T + b2, 0.0)
    return x @ w3.T + b3


if __name__ == "__main__":
    B = 32              # small demo batch -> tile_b = B, grid = (1,)
    D_VISUAL = 16       # visual_handcrafted_features
    D_AUDIO = 16        # audio_handcrafted_features
    NUM_CLASSES = 4

    key = jax.random.PRNGKey(0)
    k_v, k_a, k_p = jax.random.split(key, 3)
    visual = jax.random.normal(k_v, (B, D_VISUAL), dtype=jnp.float32)
    audio = jax.random.normal(k_a, (B, D_AUDIO), dtype=jnp.float32)
    params = init_params(k_p, D_VISUAL, D_AUDIO, NUM_CLASSES)

    out = jax.block_until_ready(audiovisual_fusion_forward(visual, audio, params))
    assert out.shape == (B, NUM_CLASSES)

    # Tight check against a reference with identical bf16/f32 dtype strategy.
    ref_bf16 = reference_forward_bf16(visual, audio, params)
    assert jnp.allclose(out, ref_bf16, atol=2e-3, rtol=2e-3), \
        "mismatch vs. bf16-mirrored reference"

    # Loose check against exact full-f32 PyTorch semantics (bf16 rounding of
    # inputs/weights on the MXU path bounds the difference).
    ref_f32 = reference_forward_f32(visual, audio, params)
    assert jnp.allclose(out, ref_f32, atol=1e-1, rtol=1e-1), \
        "mismatch vs. f32 reference"

    print("KERNEL_OK")
</pallas_src>

<mosaic_0001>
module attributes {stable_mosaic.version = 11 : i64} {
  func.func @_fusion_mlp_kernel(%arg0: i32, %arg1: memref<32x16xf32, #tpu.memory_space<vmem>>, %arg2: memref<32x16xf32, #tpu.memory_space<vmem>>, %arg3: memref<32x16xbf16, #tpu.memory_space<vmem>>, %arg4: memref<32x16xbf16, #tpu.memory_space<vmem>>, %arg5: memref<32x1xf32, #tpu.memory_space<vmem>>, %arg6: memref<16x32xbf16, #tpu.memory_space<vmem>>, %arg7: memref<16x1xf32, #tpu.memory_space<vmem>>, %arg8: memref<4x16xbf16, #tpu.memory_space<vmem>>, %arg9: memref<4x1xf32, #tpu.memory_space<vmem>>, %arg10: memref<4x32xf32, #tpu.memory_space<vmem>>) attributes {dimension_semantics = [#tpu.dimension_semantics<parallel>], iteration_bounds = array<i64: 1>, scalar_prefetch = 0 : i64, scratch_operands = 0 : i64, tpu.core_type = #tpu.core_type<tc>, window_params = [{transform_indices = @transform_0, window_bounds = array<i64: 32, 16>}, {transform_indices = @transform_1, window_bounds = array<i64: 32, 16>}, {pipeline_mode = #tpu.pipeline_mode<synchronous>, transform_indices = @transform_2, window_bounds = array<i64: 32, 16>}, {pipeline_mode = #tpu.pipeline_mode<synchronous>, transform_indices = @transform_3, window_bounds = array<i64: 32, 16>}, {pipeline_mode = #tpu.pipeline_mode<synchronous>, transform_indices = @transform_4, window_bounds = array<i64: 32, 1>}, {pipeline_mode = #tpu.pipeline_mode<synchronous>, transform_indices = @transform_5, window_bounds = array<i64: 16, 32>}, {pipeline_mode = #tpu.pipeline_mode<synchronous>, transform_indices = @transform_6, window_bounds = array<i64: 16, 1>}, {pipeline_mode = #tpu.pipeline_mode<synchronous>, transform_indices = @transform_7, window_bounds = array<i64: 4, 16>}, {pipeline_mode = #tpu.pipeline_mode<synchronous>, transform_indices = @transform_8, window_bounds = array<i64: 4, 1>}, {transform_indices = @transform_9, window_bounds = array<i64: 4, 32>}]} {
    %c0 = arith.constant 0 : index
    %c0_0 = arith.constant 0 : index
    %0 = vector.load %arg1[%c0, %c0_0] : memref<32x16xf32, #tpu.memory_space<vmem>>, vector<32x16xf32>
    %1 = arith.truncf %0 : vector<32x16xf32> to vector<32x16xbf16>
    %c0_1 = arith.constant 0 : index
    %c0_2 = arith.constant 0 : index
    %2 = vector.load %arg2[%c0_1, %c0_2] : memref<32x16xf32, #tpu.memory_space<vmem>>, vector<32x16xf32>
    %3 = arith.truncf %2 : vector<32x16xf32> to vector<32x16xbf16>
    %c0_3 = arith.constant 0 : index
    %c0_4 = arith.constant 0 : index
    %4 = vector.load %arg3[%c0_3, %c0_4] : memref<32x16xbf16, #tpu.memory_space<vmem>>, vector<32x16xbf16>
    "tpu.trace_start"() <{level = 10 : i32, message = "hd,bd->hb"}> : () -> ()
    %cst = arith.constant dense<0.000000e+00> : vector<32x32xf32>
    %5 = tpu.matmul %4, %1, %cst {dimension_numbers = #tpu.dot_dimension_numbers<[1], [1], [0], [0], [0, 0, 1, 0], [], []>} : vector<32x16xbf16>, vector<32x16xbf16>, vector<32x32xf32> -> vector<32x32xf32>
    "tpu.trace_stop"() : () -> ()
    %c0_5 = arith.constant 0 : index
    %c0_6 = arith.constant 0 : index
    %6 = vector.load %arg4[%c0_5, %c0_6] : memref<32x16xbf16, #tpu.memory_space<vmem>>, vector<32x16xbf16>
    "tpu.trace_start"() <{level = 10 : i32, message = "hd,bd->hb"}> : () -> ()
    %cst_7 = arith.constant dense<0.000000e+00> : vector<32x32xf32>
    %7 = tpu.matmul %6, %3, %cst_7 {dimension_numbers = #tpu.dot_dimension_numbers<[1], [1], [0], [0], [0, 0, 1, 0], [], []>} : vector<32x16xbf16>, vector<32x16xbf16>, vector<32x32xf32> -> vector<32x32xf32>
    "tpu.trace_stop"() : () -> ()
    %8 = arith.addf %5, %7 : vector<32x32xf32>
    %c0_8 = arith.constant 0 : index
    %c0_9 = arith.constant 0 : index
    %9 = vector.load %arg5[%c0_8, %c0_9] : memref<32x1xf32, #tpu.memory_space<vmem>>, vector<32x1xf32>
    %10 = vector.broadcast %9 : vector<32x1xf32> to vector<32x32xf32>
    %11 = arith.addf %8, %10 : vector<32x32xf32>
    %cst_10 = arith.constant 0.000000e+00 : f32
    %12 = vector.broadcast %cst_10 : f32 to vector<32x32xf32>
    %13 = arith.maximumf %11, %12 : vector<32x32xf32>
    %c0_11 = arith.constant 0 : index
    %c0_12 = arith.constant 0 : index
    %14 = vector.load %arg6[%c0_11, %c0_12] : memref<16x32xbf16, #tpu.memory_space<vmem>>, vector<16x32xbf16>
    %15 = arith.truncf %13 : vector<32x32xf32> to vector<32x32xbf16>
    %cst_13 = arith.constant dense<0.000000e+00> : vector<16x32xf32>
    %16 = tpu.matmul %14, %15, %cst_13 {dimension_numbers = #tpu.dot_dimension_numbers<[1], [0], [0], [1], [0, 0, 1, 1], [], []>} : vector<16x32xbf16>, vector<32x32xbf16>, vector<16x32xf32> -> vector<16x32xf32>
    %c0_14 = arith.constant 0 : index
    %c0_15 = arith.constant 0 : index
    %17 = vector.load %arg7[%c0_14, %c0_15] : memref<16x1xf32, #tpu.memory_space<vmem>>, vector<16x1xf32>
    %18 = vector.broadcast %17 : vector<16x1xf32> to vector<16x32xf32>
    %19 = arith.addf %16, %18 : vector<16x32xf32>
    %cst_16 = arith.constant 0.000000e+00 : f32
    %20 = vector.broadcast %cst_16 : f32 to vector<16x32xf32>
    %21 = arith.maximumf %19, %20 : vector<16x32xf32>
    %c0_17 = arith.constant 0 : index
    %c0_18 = arith.constant 0 : index
    %22 = vector.load %arg8[%c0_17, %c0_18] : memref<4x16xbf16, #tpu.memory_space<vmem>>, vector<4x16xbf16>
    %23 = arith.truncf %21 : vector<16x32xf32> to vector<16x32xbf16>
    %cst_19 = arith.constant dense<0.000000e+00> : vector<4x32xf32>
    %24 = tpu.matmul %22, %23, %cst_19 {dimension_numbers = #tpu.dot_dimension_numbers<[1], [0], [0], [1], [0, 0, 1, 1], [], []>} : vector<4x16xbf16>, vector<16x32xbf16>, vector<4x32xf32> -> vector<4x32xf32>
    %c0_20 = arith.constant 0 : index
    %c0_21 = arith.constant 0 : index
    %25 = vector.load %arg9[%c0_20, %c0_21] : memref<4x1xf32, #tpu.memory_space<vmem>>, vector<4x1xf32>
    %26 = vector.broadcast %25 : vector<4x1xf32> to vector<4x32xf32>
    %27 = arith.addf %24, %26 : vector<4x32xf32>
    %c0_22 = arith.constant 0 : index
    %c0_23 = arith.constant 0 : index
    %28 = vector.load %arg10[%c0_22, %c0_23] : memref<4x32xf32, #tpu.memory_space<vmem>>, vector<4x32xf32>
    tpu.vector_store %arg10[%c0_22, %c0_23], %27 {strides = array<i32>} : memref<4x32xf32, #tpu.memory_space<vmem>>, vector<4x32xf32>,
    return
  }
  func.func @transform_0(%arg0: i32) -> (i32, i32) {
    %c0_i32 = arith.constant 0 : i32
    %c0_i32_0 = arith.constant 0 : i32
    return %arg0, %c0_i32 : i32, i32
  }
  func.func @transform_1(%arg0: i32) -> (i32, i32) {
    %c0_i32 = arith.constant 0 : i32
    %c0_i32_0 = arith.constant 0 : i32
    return %arg0, %c0_i32 : i32, i32
  }
  func.func @transform_2(%arg0: i32) -> (i32, i32) {
    %c0_i32 = arith.constant 0 : i32
    %c0_i32_0 = arith.constant 0 : i32
    %c0_i32_1 = arith.constant 0 : i32
    return %c0_i32, %c0_i32_0 : i32, i32
  }
  func.func @transform_3(%arg0: i32) -> (i32, i32) {
    %c0_i32 = arith.constant 0 : i32
    %c0_i32_0 = arith.constant 0 : i32
    %c0_i32_1 = arith.constant 0 : i32
    return %c0_i32, %c0_i32_0 : i32, i32
  }
  func.func @transform_4(%arg0: i32) -> (i32, i32) {
    %c0_i32 = arith.constant 0 : i32
    %c0_i32_0 = arith.constant 0 : i32
    %c0_i32_1 = arith.constant 0 : i32
    return %c0_i32, %c0_i32_0 : i32, i32
  }
  func.func @transform_5(%arg0: i32) -> (i32, i32) {
    %c0_i32 = arith.constant 0 : i32
    %c0_i32_0 = arith.constant 0 : i32
    %c0_i32_1 = arith.constant 0 : i32
    return %c0_i32, %c0_i32_0 : i32, i32
  }
  func.func @transform_6(%arg0: i32) -> (i32, i32) {
    %c0_i32 = arith.constant 0 : i32
    %c0_i32_0 = arith.constant 0 : i32
    %c0_i32_1 = arith.constant 0 : i32
    return %c0_i32, %c0_i32_0 : i32, i32
  }
  func.func @transform_7(%arg0: i32) -> (i32, i32) {
    %c0_i32 = arith.constant 0 : i32
    %c0_i32_0 = arith.constant 0 : i32
    %c0_i32_1 = arith.constant 0 : i32
    return %c0_i32, %c0_i32_0 : i32, i32
  }
  func.func @transform_8(%arg0: i32) -> (i32, i32) {
    %c0_i32 = arith.constant 0 : i32
    %c0_i32_0 = arith.constant 0 : i32
    %c0_i32_1 = arith.constant 0 : i32
    return %c0_i32, %c0_i32_0 : i32, i32
  }
  func.func @transform_9(%arg0: i32) -> (i32, i32) {
    %c0_i32 = arith.constant 0 : i32
    %c0_i32_0 = arith.constant 0 : i32
    return %c0_i32, %arg0 : i32, i32
  }
}

</mosaic_0001>

<llo_original>
// kernel: tpu_custom_call.1
$region0: #{tpu_custom_call.1}
  #allocation0 [shape = 'u32[]', space=smem, size = 0x4, offset = 0x4, fixed_abs, tag = 'smem constant byte address 0x4 - core index']
  #allocation1 [shape = 'u32[72,128]{1,0:T(1,128)}', space=vmem, size = 0x9000, scoped, tag = 'internal scratch']
  %s0 = inlined_call_operand.vmem [shape: f32[32,16], index: 0, kind: input, shape index: {}]
  %s1 = inlined_call_operand.vmem [shape: f32[32,16], index: 1, kind: input, shape index: {}]
  %s2 = inlined_call_operand.vmem [shape: bf16[32,16], index: 2, kind: input, shape index: {}]
  %s3 = inlined_call_operand.vmem [shape: bf16[32,16], index: 3, kind: input, shape index: {}]
  %s4 = inlined_call_operand.vmem [shape: f32[32,1], index: 4, kind: input, shape index: {}]
  %s5 = inlined_call_operand.vmem [shape: bf16[16,32], index: 5, kind: input, shape index: {}]
  %s6 = inlined_call_operand.vmem [shape: f32[16,1], index: 6, kind: input, shape index: {}]
  %s7 = inlined_call_operand.vmem [shape: bf16[4,16], index: 7, kind: input, shape index: {}]
  %s8 = inlined_call_operand.vmem [shape: f32[4,1], index: 8, kind: input, shape index: {}]
  %s9 = inlined_call_operand.hbm [shape: f32[4,32], index: 9, kind: output, shape index: {}]
  %s10 = sld [smem:[#allocation0]]
  $region46: #{tpu_custom_call.1} parent=0
    _
  %s12 = ssub.s32 1, %s10
  %s13 = scalar_select 0, %s12, %s10
  $region1: #{tpu_custom_call.1} parent=0
    #allocation2 [shape = 'u8[2048]{0}', space=vmem, size = 0x800, scoped, tag = 'output window, operand 0, single buffered']
    #allocation3 [shape = 's32[1]{0}', space=sflag, size = 0x4, scoped, tag = 'scoped memory for tpu_custom_call.1']
    %14 = vsyncpa [#allocation3], 0
    // Predicated region
    $region2: #{tpu_custom_call.1} parent=1 // pred_check
      _
    $region3: #{tpu_custom_call.1} parent=1 // pred_check_branch
      %16 = sbr.rel (0) target = $region5
    $region4: #{tpu_custom_call.1} parent=1 // pred_region
      _
    $region5: #{tpu_custom_call.1} parent=1 // pred_fallthru
      _
    // Predicated region
    $region6: #{tpu_custom_call.1} parent=1 // pred_check
      _
    $region7: #{tpu_custom_call.1} parent=1 // pred_check_branch
      %18 = sbr.rel (0) target = $region9
    $region8: #{tpu_custom_call.1} parent=1 // pred_region
      _
    $region9: #{tpu_custom_call.1} parent=1 // pred_fallthru
      _
    // Predicated region
    $region10: #{tpu_custom_call.1} parent=1 // pred_check
      _
    $region11: #{tpu_custom_call.1} parent=1 // pred_check_branch
      %20 = sbr.rel (0) target = $region13
    $region12: #{tpu_custom_call.1} parent=1 // pred_region
      _
    $region13: #{tpu_custom_call.1} parent=1 // pred_fallthru
      _
    // Predicated region
    $region14: #{tpu_custom_call.1} parent=1 // pred_check
      _
    $region15: #{tpu_custom_call.1} parent=1 // pred_check_branch
      %22 = sbr.rel (0) target = $region17
    $region16: #{tpu_custom_call.1} parent=1 // pred_region
      _
    $region17: #{tpu_custom_call.1} parent=1 // pred_fallthru
      _
    // Predicated region
    $region18: #{tpu_custom_call.1} parent=1 // pred_check
      _
    $region19: #{tpu_custom_call.1} parent=1 // pred_check_branch
      %24 = sbr.rel (0) target = $region21
    $region20: #{tpu_custom_call.1} parent=1 // pred_region
      _
    $region21: #{tpu_custom_call.1} parent=1 // pred_fallthru
      _
    // Predicated region
    $region22: #{tpu_custom_call.1} parent=1 // pred_check
      _
    $region23: #{tpu_custom_call.1} parent=1 // pred_check_branch
      %26 = sbr.rel (0) target = $region25
    $region24: #{tpu_custom_call.1} parent=1 // pred_region
      _
    $region25: #{tpu_custom_call.1} parent=1 // pred_fallthru
      _
    // Predicated region
    $region26: #{tpu_custom_call.1} parent=1 // pred_check
      _
    $region27: #{tpu_custom_call.1} parent=1 // pred_check_branch
      %28 = sbr.rel (0) target = $region29
    $region28: #{tpu_custom_call.1} parent=1 // pred_region
      _
    $region29: #{tpu_custom_call.1} parent=1 // pred_fallthru
      _
    // Predicated region
    $region30: #{tpu_custom_call.1} parent=1 // pred_check
      _
    $region31: #{tpu_custom_call.1} parent=1 // pred_check_branch
      %30 = sbr.rel (0) target = $region33
    $region32: #{tpu_custom_call.1} parent=1 // pred_region
      _
    $region33: #{tpu_custom_call.1} parent=1 // pred_fallthru
      _
    // Predicated region
    $region34: #{tpu_custom_call.1} parent=1 // pred_check
      _
    $region35: #{tpu_custom_call.1} parent=1 // pred_check_branch
      %32 = sbr.rel (0) target = $region37
    $region36: #{tpu_custom_call.1} parent=1 // pred_region
      _
    $region37: #{tpu_custom_call.1} parent=1 // pred_fallthru
      _
    %v34 = vld [vmem:[%s0] sm:$0xff]
    %v35 = vld [vmem:[%s0 + $0x8] sm:$0xff]
    %v36 = vld [vmem:[%s0 + $0x10] sm:$0xff]
    %v37 = vld [vmem:[%s0 + $0x18] sm:$0xff]
    %v38 = vpack.c.bf16 %v35, %v34
    %v39 = vpack.c.bf16 %v37, %v36
    %v40 = vld [vmem:[%s1] sm:$0xff]
    %v41 = vld [vmem:[%s1 + $0x8] sm:$0xff]
    %v42 = vld [vmem:[%s1 + $0x10] sm:$0xff]
    %v43 = vld [vmem:[%s1 + $0x18] sm:$0xff]
    %v44 = vpack.c.bf16 %v41, %v40
    %v45 = vpack.c.bf16 %v43, %v42
    %v46 = vld [vmem:[%s2] sm:$0xf]
    %v47 = vld [vmem:[%s2 + $0x4] sm:$0xf]
    %v48 = vld [vmem:[%s2 + $0x8] sm:$0xf]
    %v49 = vld [vmem:[%s2 + $0xc] sm:$0xf]
    %v50 = vld [vmem:[%s3] sm:$0xf]
    %v51 = vld [vmem:[%s3 + $0x4] sm:$0xf]
    %v52 = vld [vmem:[%s3 + $0x8] sm:$0xf]
    %v53 = vld [vmem:[%s3 + $0xc] sm:$0xf]
    %v58 = vunpack.c.l.b16 %v50
    %v59 = vunpack.c.l.b16 %v51
    %v60 = vunpack.c.l.b16 %v52
    %v61 = vunpack.c.l.b16 %v53
    %v62 = vpack.c.b16 %v59, %v58
    %v63 = vpack.c.b16 %v61, %v60
    %vm64 = vcmask 130048
    %v66 = vsel %vm64, %v62, 0
    %v69 = vsel %vm64, %v63, 0
    %v72 = vsel %vm64, %v44, 0
    %v75 = vsel %vm64, %v45, 0
    %77 = vmatpush.bf16.xpose.msra.mxu0 0
    %78 = vmatpush.bf16.xpose.msra.mxu0 0
    %79 = vmatpush.bf16.xpose.msra.mxu0 0
    %80 = vmatpush.bf16.xpose.msra.mxu0 0
    %81 = vmatpush.bf16.xpose.msra.mxu0 0
    %82 = vmatpush.bf16.xpose.msra.mxu0 0
    %83 = vmatpush.bf16.xpose.msra.mxu0 %v75
    %84 = vmatpush.bf16.xpose.msra.mxu0 %v72
    %85 = vmatmul.bf16.gmra.mxu0 %v66
    %v86 = vpop.f32.mrf.mxu0
    %v87 = vadd.f32 0.0, %v86
    %v88 = vpop.f32.mrf.mxu0
    %v89 = vadd.f32 0.0, %v88
    %90 = vmatmul.bf16.gmra.mxu0 %v69
    %v91 = vpop.f32.mrf.mxu0
    %v92 = vadd.f32 0.0, %v91
    %v93 = vpop.f32.mrf.mxu0
    %v94 = vadd.f32 0.0, %v93
    %95 = vdwg.mxu0
    %v100 = vunpack.c.l.b16 %v46
    %v101 = vunpack.c.l.b16 %v47
    %v102 = vunpack.c.l.b16 %v48
    %v103 = vunpack.c.l.b16 %v49
    %v104 = vpack.c.b16 %v101, %v100
    %v105 = vpack.c.b16 %v103, %v102
    %v107 = vsel %vm64, %v104, 0
    %v110 = vsel %vm64, %v105, 0
    %v113 = vsel %vm64, %v38, 0
    %v116 = vsel %vm64, %v39, 0
    %118 = vmatpush.bf16.xpose.msra.mxu0 0
    %119 = vmatpush.bf16.xpose.msra.mxu0 0
    %120 = vmatpush.bf16.xpose.msra.mxu0 0
    %121 = vmatpush.bf16.xpose.msra.mxu0 0
    %122 = vmatpush.bf16.xpose.msra.mxu0 0
    %123 = vmatpush.bf16.xpose.msra.mxu0 0
    %124 = vmatpush.bf16.xpose.msra.mxu0 %v116
    %125 = vmatpush.bf16.xpose.msra.mxu0 %v113
    %126 = vmatmul.bf16.gmra.mxu0 %v107
    %v127 = vpop.f32.mrf.mxu0
    %v128 = vadd.f32 %v87, %v127
    %v129 = vpop.f32.mrf.mxu0
    %v130 = vadd.f32 %v89, %v129
    %131 = vmatmul.bf16.gmra.mxu0 %v110
    %v132 = vpop.f32.mrf.mxu0
    %v133 = vadd.f32 %v92, %v132
    %v134 = vpop.f32.mrf.mxu0
    %v135 = vadd.f32 %v94, %v134
    %136 = vdwg.mxu0
    %v137 = vld [vmem:[%s4] sm:$0xff]
    %v138 = vld [vmem:[%s4 + $0x8] sm:$0xff]
    %v139 = vld [vmem:[%s4 + $0x10] sm:$0xff]
    %v140 = vld [vmem:[%s4 + $0x18] sm:$0xff]
    %142 = vset.pattern.permute.xlu0 0
    %143 = vperm.xlu0 %142, %v137
    %v144 = vpop.permute.xlu0 %143
    %147 = vset.pattern.permute.xlu0 0
    %148 = vperm.xlu0 %147, %v138
    %v149 = vpop.permute.xlu0 %148
    %152 = vset.pattern.permute.xlu0 0
    %153 = vperm.xlu0 %152, %v139
    %v154 = vpop.permute.xlu0 %153
    %157 = vset.pattern.permute.xlu0 0
    %158 = vperm.xlu0 %157, %v140
    %v159 = vpop.permute.xlu0 %158
    %v161 = vadd.f32 %v128, %v144
    %v162 = vadd.f32 %v130, %v149
    %v163 = vadd.f32 %v133, %v154
    %v164 = vadd.f32 %v135, %v159
    %v165 = vmax.f32 %v161, 0.0
    %v166 = vmax.f32 %v162, 0.0
    %v167 = vmax.f32 %v163, 0.0
    %v168 = vmax.f32 %v164, 0.0
    %v169 = vld [vmem:[%s5] sm:$0xf]
    %v170 = vld [vmem:[%s5 + $0x4] sm:$0xf]
    %v171 = vpack.c.bf16 %v166, %v165
    %v172 = vpack.c.bf16 %v168, %v167
    %v173 = vld [vmem:[%s6] sm:$0xff]
    %v174 = vld [vmem:[%s6 + $0x8] sm:$0xff]
    %176 = vset.pattern.permute.xlu0 0
    %177 = vperm.xlu0 %176, %v173
    %v178 = vpop.permute.xlu0 %177
    %181 = vset.pattern.permute.xlu0 0
    %182 = vperm.xlu0 %181, %v174
    %v183 = vpop.permute.xlu0 %182
    %v187 = vunpack.c.l.b16 %v169
    %v188 = vunpack.c.l.b16 %v170
    %v189 = vpack.c.b16 %v188, %v187
    %vm190 = vcmask 261120
    %v192 = vsel %vm190, %v189, 0
    %194 = vmatpush.bf16.msra.mxu0 0
    %195 = vmatpush.bf16.msra.mxu0 0
    %196 = vmatpush.bf16.msra.mxu0 0
    %197 = vmatpush.bf16.msra.mxu0 0
    %198 = vmatpush.bf16.msra.mxu0 0
    %199 = vmatpush.bf16.msra.mxu0 0
    %200 = vmatpush.bf16.msra.mxu0 %v172
    %201 = vmatpush.bf16.msra.mxu0 %v171
    %202 = vmatmul.bf16.gmra.mxu0 %v192
    %v203 = vpop.f32.mrf.mxu0
    %v204 = vadd.f32 %v178, %v203
    %v205 = vpop.f32.mrf.mxu0
    %v206 = vadd.f32 %v183, %v205
    %207 = vdwg.mxu0
    %v208 = vmax.f32 %v204, 0.0
    %v209 = vmax.f32 %v206, 0.0
    %v210 = vld [vmem:[%s7] sm:$0x3]
    %v211 = vpack.c.bf16 %v209, %v208
    %v212 = vld [vmem:[%s8] sm:$0xf]
    %214 = vset.pattern.permute.xlu0 0
    %215 = vperm.xlu0 %214, %v212
    %v216 = vpop.permute.xlu0 %215
    %v219 = vsel %vm64, %v210, 0
    %221 = vmatpush.bf16.msra.mxu0 0
    %222 = vmatpush.bf16.msra.mxu0 0
    %223 = vmatpush.bf16.msra.mxu0 0
    %224 = vmatpush.bf16.msra.mxu0 0
    %225 = vmatpush.bf16.msra.mxu0 0
    %226 = vmatpush.bf16.msra.mxu0 0
    %227 = vmatpush.bf16.msra.mxu0 0
    %228 = vmatpush.bf16.msra.mxu0 %v211
    %229 = vmatmul.bf16.gmra.mxu0 %v219
    %v230 = vpop.f32.mrf.mxu0
    %v231 = vadd.f32 %v216, %v230
    %v232 = vpop.f32.mrf.mxu0
    %233 = vdwg.mxu0
    %vm234 = vcmask 257024
    %235 = vst.msk [vmem:[#allocation2] sm:$0xf] %vm234, %v231
    // Predicated region
    $region38: #{tpu_custom_call.1} parent=1 // pred_check
      _
    $region39: #{tpu_custom_call.1} parent=1 // pred_check_branch
      %237 = sbr.rel (0) target = $region41
    $region40: #{tpu_custom_call.1} parent=1 // pred_region
      %239 = vsyncadd [#allocation3], 0
      %s241 = sshll.u32 [#allocation2], 4
      %s242 = int_to_ptr.vmem [resolvable:$true] %s241
      %s243 = sshll.u32 %s9, 4
      %s244 = int_to_ptr.hbm [resolvable:$true] %s243
      %246 = dma.vmem_to_hbm [thread:$0]  %s242, 64, %s244, [#allocation3]
    $region41: #{tpu_custom_call.1} parent=1 // pred_fallthru
      _
    // Predicated region
    $region42: #{tpu_custom_call.1} parent=1 // pred_check
      _
    $region43: #{tpu_custom_call.1} parent=1 // pred_check_branch
      %248 = sbr.rel (0) target = $region45
    $region44: #{tpu_custom_call.1} parent=1 // pred_region
      %250 = dma.done [#allocation3], 64
    $region45: #{tpu_custom_call.1} parent=1 // pred_fallthru
      _
    %251 = vsyncpa [#allocation3], 1

</llo_original>
